<compile_context>
chip_gen: v6e
topology: v6e:2x2x1
jax: 0.10.0
libtpu: 0.0.40
codegen_flags: <defaults>
</compile_context>

<pallas_src>
import functools

import jax
import jax.numpy as jnp
from jax.experimental import pallas as pl
from jax.experimental.pallas import tpu as pltpu


def _wsse_kernel(pred_ref, target_ref, mask_ref, out_ref, *,
                 lam, n_inner, n_blocks, lane, tail_valid_rows, overshoot):
    """Accumulate partial sums of (pred - target)^2 * (lam + (1-lam)*mask).

    out_ref is an (8, lane) f32 accumulator block, resident across the inner
    ("arbitrary") grid axis; one such block per outer ("parallel") slab.
    """
    i = pl.program_id(0)
    k = pl.program_id(1)
    g = i * n_inner + k                      # global (unclamped) block index

    @pl.when(k == 0)
    def _():
        out_ref[...] = jnp.zeros_like(out_ref)

    # Cast to f32 in-register; inputs stay narrow in HBM/VMEM.
    p = pred_ref[...].astype(jnp.float32)
    t = target_ref[...].astype(jnp.float32)
    m = mask_ref[...].astype(jnp.float32)
    d = p - t
    wmse = d * d * (lam + (1.0 - lam) * m)   # == mse * (mask + lam*(1-mask))

    def accumulate(x):
        r = x.shape[0]
        if r % 8 == 0:
            # Tile-preserving reshape -> pure VPU vreg adds (no XLU reduce).
            out_ref[...] += jnp.sum(x.reshape(r // 8, 8, lane), axis=0)
        else:
            # Tiny single-block case: one sublane reduce into row 0.
            out_ref[0:1, :] += jnp.sum(x, axis=0, keepdims=True)

    if tail_valid_rows is not None:
        # A partial last block exists.  The row mask runs ONLY on that block;
        # every other step takes the mask-free fast path.
        last = n_blocks - 1

        @pl.when(g == last)
        def _():
            rid = jax.lax.broadcasted_iota(jnp.int32, wmse.shape, 0)
            # Keep the select: DMA-padded rows may hold garbage/NaN; a select
            # guarantees they cannot propagate into the sum.
            accumulate(jnp.where(rid < tail_valid_rows, wmse, 0.0))

        @pl.when(g < last)
        def _():
            accumulate(wmse)
    elif overshoot:
        # Grid has one extra (duplicate) step when n_blocks is odd: skip it.
        @pl.when(g < n_blocks)
        def _():
            accumulate(wmse)
    else:
        accumulate(wmse)


def _input_vmem_budget_bytes():
    """VMEM budget for the double-buffered input blocks (3 inputs x 2 bufs)."""
    kind = ""
    try:
        kind = jax.devices()[0].device_kind.lower()
    except Exception:
        pass
    if ("v6" in kind) or ("v7" in kind):
        # v6e / v7x: ~4 MiB per f32-input block -> 24 MiB double-buffered,
        # comfortably under the 32 MiB scoped default and v7x's 64 MiB VMEM.
        return 24 * 1024 * 1024
    # v5e (and unknown chips): ~2 MiB per input block -> ~12 MiB.
    return 12 * 1024 * 1024


def mask_weighted_heatmap_loss(pred, target, mask, lambda_weight=0.1,
                               row_tile=None):
    """pred/target/mask: [B, 1, H, W]; any float dtype for pred/target, any
    numeric/bool dtype for mask.  Returns the scalar f32 loss."""
    assert pred.shape == target.shape == mask.shape
    if mask.dtype == jnp.bool_:
        # Rare path: one cheap pass over the smallest input keeps the kernel
        # on plain numeric dtypes.
        mask = mask.astype(jnp.uint8)

    n_elems = 1
    for s in pred.shape:
        n_elems *= int(s)
    lam = float(lambda_weight)

    # ---- 2-D view ---------------------------------------------------------
    # Preferred: lane-dense flat view (n_rows, lane), lane a multiple of 128.
    # Fallback (element count not a multiple of 128): natural (rows, W) view
    # (block last dim == full dim) -- never materialize a padded HBM copy.
    lane = None
    for cand in (512, 256, 128):
        if n_elems % cand == 0:
            lane = cand
            break
    if lane is None:
        lane = int(pred.shape[-1])
    n_rows = n_elems // lane
    p2 = pred.reshape(n_rows, lane)
    t2 = target.reshape(n_rows, lane)
    m2 = mask.reshape(n_rows, lane)

    sz_sum = p2.dtype.itemsize + t2.dtype.itemsize + m2.dtype.itemsize
    lane_vmem = max(128, ((lane + 127) // 128) * 128)   # VMEM lane padding

    # ---- row tiling ---------------------------------------------------------
    budget = _input_vmem_budget_bytes()
    row_cap = budget // (2 * lane_vmem * sz_sum)         # double-buffered
    row_cap = max(32, (row_cap // 32) * 32)              # 32: bf16/int8 packing

    if row_tile is None:
        if n_rows <= row_cap:
            # Whole tensor fits in one block.  Only split into two blocks when
            # each half is still a sizeable DMA (>= ~512 KiB f32-equivalent),
            # so the v7x 2-TC parallel axis has real work; small heatmaps stay
            # a single grid step (per-step overhead dominates them).
            half32 = pl.cdiv(pl.cdiv(n_rows, 2), 32) * 32
            if (n_rows >= 64 and half32 < n_rows
                    and half32 * lane_vmem * 4 >= 512 * 1024):
                row_tile = min(row_cap, half32)
            else:
                row_tile = n_rows
        else:
            row_tile = row_cap
    row_tile = int(min(int(row_tile), n_rows))
    if row_tile < n_rows:
        row_tile = max(8, (row_tile // 8) * 8)            # sublane-aligned

    n_blocks = pl.cdiv(n_rows, row_tile)
    tail = n_rows - (n_blocks - 1) * row_tile
    tail_valid_rows = None if tail == row_tile else tail

    # ---- robust 2-way outer split (v7x megacore) ---------------------------
    n_outer = 2 if n_blocks >= 2 else 1
    n_inner = pl.cdiv(n_blocks, n_outer)
    overshoot = (n_outer * n_inner) != n_blocks

    kernel = functools.partial(
        _wsse_kernel, lam=lam, n_inner=n_inner, n_blocks=n_blocks,
        lane=lane, tail_valid_rows=tail_valid_rows, overshoot=overshoot)

    def in_map(i, k):
        g = i * n_inner + k
        if overshoot:                                     # static python bool
            g = jnp.minimum(g, n_blocks - 1)              # clamp duplicate step
        return (g, 0)

    in_spec = pl.BlockSpec((row_tile, lane), in_map)
    out_spec = pl.BlockSpec((8, lane), lambda i, k: (i, 0))

    # Explicit VMEM budget: double-buffered inputs + resident outputs + margin
    # for Mosaic-internal scratch.
    vmem_limit = (2 * row_tile * lane_vmem * sz_sum
                  + 4 * 8 * lane_vmem * 4 + (4 << 20))
    vmem_limit = int(max(vmem_limit, 16 << 20))

    partials = pl.pallas_call(
        kernel,
        out_shape=jax.ShapeDtypeStruct((n_outer * 8, lane), jnp.float32),
        grid=(n_outer, n_inner),
        in_specs=[in_spec, in_spec, in_spec],
        out_specs=out_spec,
        compiler_params=pltpu.CompilerParams(
            dimension_semantics=("parallel", "arbitrary"),
            vmem_limit_bytes=vmem_limit),
    )(p2, t2, m2)

    # Tiny final reduce + mean (<= 8 KiB of partials) stays in the wrapper.
    return (jnp.sum(partials) / jnp.float32(n_elems)).astype(jnp.float32)


def _reference_loss(pred, target, mask, lambda_weight=0.1):
    p = pred.astype(jnp.float32)
    t = target.astype(jnp.float32)
    m = mask.astype(jnp.float32)
    mse = (p - t) ** 2
    weight = m + lambda_weight * (1.0 - m)
    return jnp.mean(mse * weight)


if __name__ == "__main__":
    key = jax.random.PRNGKey(0)

    def make_inputs(case_key, shape, pt_dtype=jnp.float32, mask_dtype=jnp.float32):
        k1, k2, k3 = jax.random.split(case_key, 3)
        pred = jax.random.normal(k1, shape, dtype=pt_dtype)
        target = jax.random.normal(k2, shape, dtype=pt_dtype)
        mask = (jax.random.uniform(k3, shape) > 0.5).astype(mask_dtype)
        return pred, target, mask

    # Heatmaps are [B, 1, H, W]; small shapes exercising every code path.
    cases = [
        ((2, 1, 16, 16), jnp.float32, jnp.float32, {}),       # tiny, 1 row block
        ((2, 1, 64, 64), jnp.float32, jnp.float32, {}),       # single-block fast path
        ((2, 1, 64, 64), jnp.bfloat16, jnp.int8, {}),         # narrow dtypes on HBM
        ((2, 1, 64, 64), jnp.float32, jnp.bool_, {}),         # bool mask
        ((4, 1, 64, 64), jnp.float32, jnp.float32, {"row_tile": 8}),  # 2x2 grid
        ((2, 1, 80, 64), jnp.float32, jnp.float32, {"row_tile": 8}),  # tail + overshoot
        ((2, 1, 17, 19), jnp.float32, jnp.float32, {}),       # non-128 count, no pad
    ]

    keys = jax.random.split(key, len(cases))
    for case_key, (shape, pt_dt, m_dt, kwargs) in zip(keys, cases):
        pred, target, mask = make_inputs(case_key, shape, pt_dt, m_dt)
        loss = mask_weighted_heatmap_loss(pred, target, mask,
                                          lambda_weight=0.1, **kwargs)
        loss = jax.block_until_ready(loss)
        ref = _reference_loss(pred, target, mask, lambda_weight=0.1)
        assert jnp.allclose(loss, ref, rtol=1e-5, atol=1e-6), (
            shape, pt_dt, m_dt, kwargs, loss, ref)

    print("KERNEL_OK")
</pallas_src>

<mosaic_0001>
module attributes {stable_mosaic.version = 11 : i64} {
  func.func @_wsse_kernel(%arg0: i32, %arg1: i32, %arg2: memref<1x512xf32, #tpu.memory_space<vmem>>, %arg3: memref<1x512xf32, #tpu.memory_space<vmem>>, %arg4: memref<1x512xf32, #tpu.memory_space<vmem>>, %arg5: memref<8x512xf32, #tpu.memory_space<vmem>>) attributes {dimension_semantics = [#tpu.dimension_semantics<parallel>, #tpu.dimension_semantics<arbitrary>], iteration_bounds = array<i64: 1, 1>, scalar_prefetch = 0 : i64, scratch_operands = 0 : i64, tpu.core_type = #tpu.core_type<tc>, window_params = [{transform_indices = @transform_0, window_bounds = array<i64: 1, 512>}, {transform_indices = @transform_1, window_bounds = array<i64: 1, 512>}, {transform_indices = @transform_2, window_bounds = array<i64: 1, 512>}, {transform_indices = @transform_3, window_bounds = array<i64: 8, 512>}]} {
    %c0_i32 = arith.constant 0 : i32
    %0 = arith.cmpi eq, %arg1, %c0_i32 : i32
    %1 = arith.extui %0 : i1 to i32
    %c0_i32_0 = arith.constant 0 : i32
    %2 = arith.cmpi ne, %1, %c0_i32_0 : i32
    scf.if %2 {
      %cst_12 = arith.constant 0.000000e+00 : f32
      %18 = vector.broadcast %cst_12 : f32 to vector<8x512xf32>
      %c0_13 = arith.constant 0 : index
      %c0_14 = arith.constant 0 : index
      %19 = vector.load %arg5[%c0_13, %c0_14] : memref<8x512xf32, #tpu.memory_space<vmem>>, vector<8x512xf32>
      tpu.vector_store %arg5[%c0_13, %c0_14], %18 {strides = array<i32>} : memref<8x512xf32, #tpu.memory_space<vmem>>, vector<8x512xf32>,
    } else {
    }
    %c0 = arith.constant 0 : index
    %c0_1 = arith.constant 0 : index
    %3 = vector.load %arg2[%c0, %c0_1] : memref<1x512xf32, #tpu.memory_space<vmem>>, vector<1x512xf32>
    %c0_2 = arith.constant 0 : index
    %c0_3 = arith.constant 0 : index
    %4 = vector.load %arg3[%c0_2, %c0_3] : memref<1x512xf32, #tpu.memory_space<vmem>>, vector<1x512xf32>
    %c0_4 = arith.constant 0 : index
    %c0_5 = arith.constant 0 : index
    %5 = vector.load %arg4[%c0_4, %c0_5] : memref<1x512xf32, #tpu.memory_space<vmem>>, vector<1x512xf32>
    %6 = arith.subf %3, %4 : vector<1x512xf32>
    %7 = arith.mulf %6, %6 : vector<1x512xf32>
    %cst = arith.constant 0.899999976 : f32
    %8 = vector.broadcast %cst : f32 to vector<1x512xf32>
    %9 = arith.mulf %8, %5 : vector<1x512xf32>
    %cst_6 = arith.constant 1.000000e-01 : f32
    %10 = vector.broadcast %cst_6 : f32 to vector<1x512xf32>
    %11 = arith.addf %10, %9 : vector<1x512xf32>
    %12 = arith.mulf %7, %11 : vector<1x512xf32>
    %c0_7 = arith.constant 0 : index
    %c0_8 = arith.constant 0 : index
    %13 = vector.load %arg5[%c0_7, %c0_8] : memref<8x512xf32, #tpu.memory_space<vmem>>, vector<1x512xf32>
    %cst_9 = arith.constant dense<0.000000e+00> : vector<512xf32>
    %14 = vector.multi_reduction <add>, %12, %cst_9 [0] : vector<1x512xf32> to vector<512xf32>
    %15 = vector.shape_cast %14 : vector<512xf32> to vector<1x512xf32>
    %16 = arith.addf %13, %15 : vector<1x512xf32>
    %c0_10 = arith.constant 0 : index
    %c0_11 = arith.constant 0 : index
    %17 = vector.load %arg5[%c0_10, %c0_11] : memref<8x512xf32, #tpu.memory_space<vmem>>, vector<1x512xf32>
    tpu.vector_store %arg5[%c0_10, %c0_11], %16 {strides = array<i32>} : memref<8x512xf32, #tpu.memory_space<vmem>>, vector<1x512xf32>,
    return
  }
  func.func @transform_0(%arg0: i32, %arg1: i32) -> (i32, i32) {
    %c1_i32 = arith.constant 1 : i32
    %0 = arith.muli %arg0, %c1_i32 : i32
    %1 = arith.addi %0, %arg1 : i32
    %c0_i32 = arith.constant 0 : i32
    %c0_i32_0 = arith.constant 0 : i32
    return %1, %c0_i32 : i32, i32
  }
  func.func @transform_1(%arg0: i32, %arg1: i32) -> (i32, i32) {
    %c1_i32 = arith.constant 1 : i32
    %0 = arith.muli %arg0, %c1_i32 : i32
    %1 = arith.addi %0, %arg1 : i32
    %c0_i32 = arith.constant 0 : i32
    %c0_i32_0 = arith.constant 0 : i32
    return %1, %c0_i32 : i32, i32
  }
  func.func @transform_2(%arg0: i32, %arg1: i32) -> (i32, i32) {
    %c1_i32 = arith.constant 1 : i32
    %0 = arith.muli %arg0, %c1_i32 : i32
    %1 = arith.addi %0, %arg1 : i32
    %c0_i32 = arith.constant 0 : i32
    %c0_i32_0 = arith.constant 0 : i32
    return %1, %c0_i32 : i32, i32
  }
  func.func @transform_3(%arg0: i32, %arg1: i32) -> (i32, i32) {
    %c0_i32 = arith.constant 0 : i32
    %c0_i32_0 = arith.constant 0 : i32
    return %arg0, %c0_i32 : i32, i32
  }
}

</mosaic_0001>

<llo_original>
// kernel: tpu_custom_call.1
$region0: #{tpu_custom_call.1}
  #allocation0 [shape = 'u32[]', space=smem, size = 0x4, offset = 0x4, fixed_abs, tag = 'smem constant byte address 0x4 - core index']
  #allocation1 [shape = 'u32[144,128]{1,0:T(1,128)}', space=vmem, size = 0x12000, scoped, tag = 'internal scratch']
  %s0 = inlined_call_operand.hbm [shape: f32[1,512], index: 0, kind: input, shape index: {}]
  %s1 = inlined_call_operand.hbm [shape: f32[1,512], index: 1, kind: input, shape index: {}]
  %s2 = inlined_call_operand.hbm [shape: f32[1,512], index: 2, kind: input, shape index: {}]
  %s3 = inlined_call_operand.hbm [shape: f32[8,512], index: 3, kind: output, shape index: {}]
  %s4 = sld [smem:[#allocation0]]
  $region38: #{tpu_custom_call.1} parent=0
    _
  %s6 = ssub.s32 1, %s4
  %s7 = scalar_select 0, %s6, %s4
  $region1: #{tpu_custom_call.1} parent=0
    #allocation2 [shape = 'u8[2048]{0}', space=vmem, size = 0x800, scoped, tag = 'input window, operand 0, single buffered']
    #allocation3 [shape = 's32[1]{0}', space=sflag, size = 0x4, scoped, tag = 'scoped memory for tpu_custom_call.1']
    #allocation4 [shape = 's32[1]{0}', space=sflag, size = 0x4, scoped, tag = 'scoped memory for tpu_custom_call.1']
    #allocation5 [shape = 'u8[2048]{0}', space=vmem, size = 0x800, scoped, tag = 'input window, operand 1, single buffered']
    #allocation6 [shape = 's32[1]{0}', space=sflag, size = 0x4, scoped, tag = 'scoped memory for tpu_custom_call.1']
    #allocation7 [shape = 'u8[2048]{0}', space=vmem, size = 0x800, scoped, tag = 'input window, operand 2, single buffered']
    #allocation8 [shape = 'u8[16384]{0}', space=vmem, size = 0x4000, scoped, tag = 'output window, operand 0, single buffered']
    %8 = vsyncpa [#allocation3], 0
    %9 = vsyncpa [#allocation6], 0
    %10 = vsyncpa [#allocation4], 0
    // Predicated region
    $region2: #{tpu_custom_call.1} parent=1 // pred_check
      _
    $region3: #{tpu_custom_call.1} parent=1 // pred_check_branch
      %12 = sbr.rel (0) target = $region5
    $region4: #{tpu_custom_call.1} parent=1 // pred_region
      %s13 = sadd.s32 0, 0
      %s15 = ssub.s32 64, 64
      %16 = vsyncadd [#allocation3], %s15
      %s17 = smul.addr %s13, 4
      %s18 = smul.addr %s17, 16
      %s19 = scalar_lea.hbm %s0, %s18
      %s21 = sshll.u32 [#allocation2], 4
      %s22 = int_to_ptr.vmem [resolvable:$true] %s21
      %24 = dma.hbm_to_vmem [thread:$0]  %s19, 64, %s22, [#allocation3]
    $region5: #{tpu_custom_call.1} parent=1 // pred_fallthru
      _
    // Predicated region
    $region6: #{tpu_custom_call.1} parent=1 // pred_check
      _
    $region7: #{tpu_custom_call.1} parent=1 // pred_check_branch
      %26 = sbr.rel (0) target = $region9
    $region8: #{tpu_custom_call.1} parent=1 // pred_region
      %s27 = sadd.s32 0, 0
      %s29 = ssub.s32 64, 64
      %30 = vsyncadd [#allocation6], %s29
      %s31 = smul.addr %s27, 4
      %s32 = smul.addr %s31, 16
      %s33 = scalar_lea.hbm %s1, %s32
      %s35 = sshll.u32 [#allocation5], 4
      %s36 = int_to_ptr.vmem [resolvable:$true] %s35
      %38 = dma.hbm_to_vmem [thread:$0]  %s33, 64, %s36, [#allocation6]
    $region9: #{tpu_custom_call.1} parent=1 // pred_fallthru
      _
    // Predicated region
    $region10: #{tpu_custom_call.1} parent=1 // pred_check
      _
    $region11: #{tpu_custom_call.1} parent=1 // pred_check_branch
      %40 = sbr.rel (0) target = $region13
    $region12: #{tpu_custom_call.1} parent=1 // pred_region
      %s41 = sadd.s32 0, 0
      %s43 = ssub.s32 64, 64
      %44 = vsyncadd [#allocation6], %s43
      %s45 = smul.addr %s41, 4
      %s46 = smul.addr %s45, 16
      %s47 = scalar_lea.hbm %s2, %s46
      %s49 = sshll.u32 [#allocation7], 4
      %s50 = int_to_ptr.vmem [resolvable:$true] %s49
      %52 = dma.hbm_to_vmem [thread:$0]  %s47, 64, %s50, [#allocation6]
    $region13: #{tpu_custom_call.1} parent=1 // pred_fallthru
      _
    // Predicated region
    $region14: #{tpu_custom_call.1} parent=1 // pred_check
      _
    $region15: #{tpu_custom_call.1} parent=1 // pred_check_branch
      %54 = sbr.rel (0) target = $region17
    $region16: #{tpu_custom_call.1} parent=1 // pred_region
      %55 = dma.done [#allocation3], 64
    $region17: #{tpu_custom_call.1} parent=1 // pred_fallthru
      _
    // Predicated region
    $region18: #{tpu_custom_call.1} parent=1 // pred_check
      _
    $region19: #{tpu_custom_call.1} parent=1 // pred_check_branch
      %57 = sbr.rel (0) target = $region21
    $region20: #{tpu_custom_call.1} parent=1 // pred_region
      %58 = dma.done [#allocation6], 64
    $region21: #{tpu_custom_call.1} parent=1 // pred_fallthru
      _
    // Predicated region
    $region22: #{tpu_custom_call.1} parent=1 // pred_check
      _
    $region23: #{tpu_custom_call.1} parent=1 // pred_check_branch
      %60 = sbr.rel (0) target = $region25
    $region24: #{tpu_custom_call.1} parent=1 // pred_region
      %61 = dma.done [#allocation6], 64
    $region25: #{tpu_custom_call.1} parent=1 // pred_fallthru
      _
    %s62 = sadd.s32 0, 0
    %s63 = sadd.s32 0, 0
    %s64 = sadd.s32 0, 0
    %p65 = scmp.eq.s32.totalorder 0, 0
    // Predicated region
    $region26: #{tpu_custom_call.1} parent=1 // pred_check
      %p66 = pneg %p65
    $region27: #{tpu_custom_call.1} parent=1 // pred_check_branch
      %68 = sbr.rel (%p66) target = $region29
    $region28: #{tpu_custom_call.1} parent=1 // pred_region
      %69 = vst [vmem:[#allocation8] sm:$0xff] 0.0
      %70 = vst [vmem:[#allocation8 + $0x8] sm:$0xff] 0.0
      %71 = vst [vmem:[#allocation8 + $0x10] sm:$0xff] 0.0
      %72 = vst [vmem:[#allocation8 + $0x18] sm:$0xff] 0.0
    $region29: #{tpu_custom_call.1} parent=1 // pred_fallthru
      _
    %v73 = vld [vmem:[#allocation2] sm:$0xf]
    %v74 = vld [vmem:[#allocation5] sm:$0xf]
    %v75 = vld [vmem:[#allocation7] sm:$0xf]
    %v76 = vsub.f32 %v73, %v74
    %v77 = vmul.f32 %v76, %v76
    %v78 = vmul.f32 %v75, 0.9
    %v79 = vadd.f32 %v78, 0.1
    %v80 = vmul.f32 %v77, %v79
    %v81 = vld [vmem:[#allocation8] ss:$8 sm:$0xf]
    %v82 = vadd.f32 %v80, 0.0
    %v83 = vadd.f32 %v81, %v82
    %v84 = vlaneseq
    %vm85 = vcmp.ge.s32.totalorder %v84, 0
    %vm86 = vcmp.lt.s32.totalorder %v84, 512
    %vm87 = vmand %vm85, %vm86
    %88 = vst.msk [vmem:[#allocation8] ss:$8 sm:$0xf] %vm87, %v83
    %89 = vst.msk [vmem:[#allocation8] ss:$8 sm:$0x0] %vm87, %v83
    // Predicated region
    $region30: #{tpu_custom_call.1} parent=1 // pred_check
      _
    $region31: #{tpu_custom_call.1} parent=1 // pred_check_branch
      %91 = sbr.rel (0) target = $region33
    $region32: #{tpu_custom_call.1} parent=1 // pred_region
      %s93 = ssub.s32 512, 512
      %94 = vsyncadd [#allocation4], %s93
      %s96 = sshll.u32 [#allocation8], 4
      %s97 = int_to_ptr.vmem [resolvable:$true] %s96
      %99 = dma.vmem_to_hbm [thread:$0]  %s97, 512, %s3, [#allocation4]
    $region33: #{tpu_custom_call.1} parent=1 // pred_fallthru
      _
    // Predicated region
    $region34: #{tpu_custom_call.1} parent=1 // pred_check
      _
    $region35: #{tpu_custom_call.1} parent=1 // pred_check_branch
      %101 = sbr.rel (0) target = $region37
    $region36: #{tpu_custom_call.1} parent=1 // pred_region
      %102 = dma.done [#allocation4], 512
    $region37: #{tpu_custom_call.1} parent=1 // pred_fallthru
      _
    %103 = vsyncpa [#allocation3], 1
    %104 = vsyncpa [#allocation6], 1
    %105 = vsyncpa [#allocation4], 1

</llo_original>
